<compile_context>
chip_gen: v7x
topology: tpu7x:2x2x1
jax: 0.10.0
libtpu: 0.0.40
codegen_flags: <defaults>
</compile_context>

<pallas_src>
import jax
import jax.numpy as jnp
from jax.experimental import pallas as pl
from jax.experimental.pallas import tpu as pltpu


def _round_up(x: int, m: int) -> int:
    return ((x + m - 1) // m) * m


def gmf_kernel(u_ref, i_ref, w_ref, b_ref, o_ref):
    """One batch-tile of the GMF forward pass (E-major layout).

    u_ref, i_ref : (E, TB)  gathered user / item embeddings (batch on lanes)
    w_ref        : (E, 1)   Linear weight as a column (broadcast over lanes)
    b_ref        : (1, 1)   Linear bias (SMEM scalar)
    o_ref        : (1, TB)  sigmoid(logits), lane-dense output slab
    """
    prod = u_ref[...] * i_ref[...]                          # (E, TB)  VPU elementwise
    weighted = prod * w_ref[...]                            # (E, TB)  lane-broadcast of (E,1)
    logits = jnp.sum(weighted, axis=0, keepdims=True)       # (1, TB)  sublane reduction (XLU)
    logits = logits + b_ref[0, 0]                           # scalar add from SMEM
    o_ref[...] = jax.nn.sigmoid(logits)                     # EUP transcendental


def gmf_forward(user_indices, item_indices, user_table, item_table, weight, bias,
                *, block_b=1024):
    """GMF forward: gather (E-major) in JAX glue, fused mul+reduce+sigmoid in Pallas."""
    B = user_indices.shape[0]
    E = user_table.shape[1]

    # Effective batch tile: multiple of 128 lanes, no larger than needed.
    tile = min(block_b, _round_up(B, 128))
    tile = _round_up(tile, 128)
    B_pad = _round_up(B, tile)
    n_tiles = B_pad // tile

    # Pad indices (index 0 is always valid); padded outputs are discarded.
    pad = B_pad - B
    if pad:
        user_indices = jnp.pad(user_indices, (0, pad))
        item_indices = jnp.pad(item_indices, (0, pad))

    # Glue: embedding lookups, presented E-major (E, B_pad).
    user_emb_t = jnp.take(user_table, user_indices, axis=0).astype(jnp.float32).T
    item_emb_t = jnp.take(item_table, item_indices, axis=0).astype(jnp.float32).T

    w_col = weight.reshape(E, 1).astype(jnp.float32)         # Linear weight as column
    b_2d = bias.reshape(1, 1).astype(jnp.float32)            # scalar bias -> SMEM

    out = pl.pallas_call(
        gmf_kernel,
        out_shape=jax.ShapeDtypeStruct((1, B_pad), jnp.float32),
        grid_spec=pltpu.PrefetchScalarGridSpec(
            num_scalar_prefetch=0,
            grid=(n_tiles,),
            in_specs=[
                pl.BlockSpec((E, tile), lambda i: (0, i)),    # user embeddings (E-major)
                pl.BlockSpec((E, tile), lambda i: (0, i)),    # item embeddings (E-major)
                pl.BlockSpec((E, 1), lambda i: (0, 0)),       # Linear weight column (replicated)
                pl.BlockSpec(memory_space=pltpu.MemorySpace.SMEM),  # bias scalar in SMEM
            ],
            out_specs=pl.BlockSpec((1, tile), lambda i: (0, i)),    # lane-dense output slab
        ),
        compiler_params=pltpu.CompilerParams(
            dimension_semantics=("parallel",)),
    )(user_emb_t, item_emb_t, w_col, b_2d)

    # (1, B_pad) lane-dense slab -> (B, 1) to match the PyTorch module.
    return out[0, :B].reshape(B, 1)


if __name__ == "__main__":
    # Small, deterministic synthetic setup.
    num_users = 10
    num_items = 12
    embed_size = 32
    batch = 8

    key = jax.random.PRNGKey(0)
    k_u, k_i, k_w, k_b, k_ui, k_ii = jax.random.split(key, 6)

    # nn.Embedding default init: N(0, 1)
    user_table = jax.random.normal(k_u, (num_users, embed_size), dtype=jnp.float32)
    item_table = jax.random.normal(k_i, (num_items, embed_size), dtype=jnp.float32)

    # nn.Linear default init: U(-1/sqrt(E), 1/sqrt(E))
    bound = 1.0 / (embed_size ** 0.5)
    weight = jax.random.uniform(k_w, (1, embed_size), jnp.float32, -bound, bound)
    bias = jax.random.uniform(k_b, (1,), jnp.float32, -bound, bound)

    user_indices = jax.random.randint(k_ui, (batch,), 0, num_users)
    item_indices = jax.random.randint(k_ii, (batch,), 0, num_items)

    rating = gmf_forward(user_indices, item_indices,
                         user_table, item_table, weight, bias)
    rating = jax.block_until_ready(rating)

    # Pure-JAX reference check.
    u = user_table[user_indices]
    it = item_table[item_indices]
    ref = jax.nn.sigmoid((u * it) @ weight.T + bias)
    assert rating.shape == (batch, 1)
    assert jnp.allclose(rating, ref, atol=1e-5, rtol=1e-5)

    print("KERNEL_OK")
</pallas_src>

<mosaic_0001>
module attributes {stable_mosaic.version = 11 : i64} {
  func.func @gmf_kernel(%arg0: i32, %arg1: memref<32x128xf32, #tpu.memory_space<vmem>>, %arg2: memref<32x128xf32, #tpu.memory_space<vmem>>, %arg3: memref<32x1xf32, #tpu.memory_space<vmem>>, %arg4: memref<1x1xf32, #tpu.memory_space<smem>>, %arg5: memref<1x128xf32, #tpu.memory_space<vmem>>) attributes {dimension_semantics = [#tpu.dimension_semantics<parallel>], iteration_bounds = array<i64: 1>, scalar_prefetch = 0 : i64, scratch_operands = 0 : i64, tpu.core_type = #tpu.core_type<tc>, window_params = [{transform_indices = @transform_0, window_bounds = array<i64: 32, 128>}, {transform_indices = @transform_1, window_bounds = array<i64: 32, 128>}, {pipeline_mode = #tpu.pipeline_mode<synchronous>, transform_indices = @transform_2, window_bounds = array<i64: 32, 1>}, {transform_indices = @transform_3, window_bounds = array<i64: 1, 1>}, {transform_indices = @transform_4, window_bounds = array<i64: 1, 128>}]} {
    %c0 = arith.constant 0 : index
    %c0_0 = arith.constant 0 : index
    %0 = vector.load %arg1[%c0, %c0_0] : memref<32x128xf32, #tpu.memory_space<vmem>>, vector<32x128xf32>
    %c0_1 = arith.constant 0 : index
    %c0_2 = arith.constant 0 : index
    %1 = vector.load %arg2[%c0_1, %c0_2] : memref<32x128xf32, #tpu.memory_space<vmem>>, vector<32x128xf32>
    %2 = arith.mulf %0, %1 : vector<32x128xf32>
    %c0_3 = arith.constant 0 : index
    %c0_4 = arith.constant 0 : index
    %3 = vector.load %arg3[%c0_3, %c0_4] : memref<32x1xf32, #tpu.memory_space<vmem>>, vector<32x1xf32>
    %4 = vector.broadcast %3 : vector<32x1xf32> to vector<32x128xf32>
    %5 = arith.mulf %2, %4 : vector<32x128xf32>
    %cst = arith.constant dense<0.000000e+00> : vector<128xf32>
    %6 = vector.multi_reduction <add>, %5, %cst [0] : vector<32x128xf32> to vector<128xf32>
    %7 = vector.shape_cast %6 : vector<128xf32> to vector<1x128xf32>
    %c0_5 = arith.constant 0 : index
    %c0_6 = arith.constant 0 : index
    %8 = memref.load %arg4[%c0_5, %c0_6] : memref<1x1xf32, #tpu.memory_space<smem>>
    %9 = vector.broadcast %8 : f32 to vector<1x128xf32>
    %10 = arith.addf %7, %9 : vector<1x128xf32>
    %11 = arith.negf %10 : vector<1x128xf32>
    %12 = math.exp %11 : vector<1x128xf32>
    %cst_7 = arith.constant 1.000000e+00 : f32
    %13 = vector.broadcast %cst_7 : f32 to vector<1x128xf32>
    %14 = arith.addf %13, %12 : vector<1x128xf32>
    %15 = arith.divf %13, %14 : vector<1x128xf32>
    %c0_8 = arith.constant 0 : index
    %c0_9 = arith.constant 0 : index
    %16 = vector.load %arg5[%c0_8, %c0_9] : memref<1x128xf32, #tpu.memory_space<vmem>>, vector<1x128xf32>
    tpu.vector_store %arg5[%c0_8, %c0_9], %15 {strides = array<i32>} : memref<1x128xf32, #tpu.memory_space<vmem>>, vector<1x128xf32>,
    return
  }
  func.func @transform_0(%arg0: i32) -> (i32, i32) {
    %c0_i32 = arith.constant 0 : i32
    %c0_i32_0 = arith.constant 0 : i32
    return %c0_i32, %arg0 : i32, i32
  }
  func.func @transform_1(%arg0: i32) -> (i32, i32) {
    %c0_i32 = arith.constant 0 : i32
    %c0_i32_0 = arith.constant 0 : i32
    return %c0_i32, %arg0 : i32, i32
  }
  func.func @transform_2(%arg0: i32) -> (i32, i32) {
    %c0_i32 = arith.constant 0 : i32
    %c0_i32_0 = arith.constant 0 : i32
    %c0_i32_1 = arith.constant 0 : i32
    return %c0_i32, %c0_i32_0 : i32, i32
  }
  func.func @transform_3(%arg0: i32) -> (i32, i32) {
    %c0_i32 = arith.constant 0 : i32
    %c0_i32_0 = arith.constant 0 : i32
    %c0_i32_1 = arith.constant 0 : i32
    return %c0_i32, %c0_i32_0 : i32, i32
  }
  func.func @transform_4(%arg0: i32) -> (i32, i32) {
    %c0_i32 = arith.constant 0 : i32
    %c0_i32_0 = arith.constant 0 : i32
    return %c0_i32, %arg0 : i32, i32
  }
}

</mosaic_0001>

<llo_original>
// kernel: tpu_custom_call.1
$region0: #{tpu_custom_call.1}
  #allocation0 [shape = 'u32[]', space=smem, size = 0x4, offset = 0x4, fixed_abs, tag = 'smem constant byte address 0x4 - core index']
  #allocation1 [shape = 'u32[144,128]{1,0:T(1,128)}', space=vmem, size = 0x12000, scoped, tag = 'internal scratch']
  #allocation2 [shape = 'f32[1,1]{1,0:T(1,128)S(6)}', space=smem, size = 0x200, scoped, tag = 'scoped memory for tpu_custom_call.1']
  %s0 = inlined_call_operand.vmem [shape: f32[32,128], index: 0, kind: input, shape index: {}]
  %s1 = inlined_call_operand.hbm [shape: f32[32,128], index: 1, kind: input, shape index: {}]
  %s2 = inlined_call_operand.vmem [shape: f32[32,1], index: 2, kind: input, shape index: {}]
  %s3 = inlined_call_operand.<no memory space> [shape: f32[1,1], index: 3, kind: input, shape index: {}]
  %s4 = inlined_call_operand.hbm [shape: f32[1,128], index: 4, kind: output, shape index: {}]
  %s5 = sld [smem:[#allocation0]]
  $region30: #{tpu_custom_call.1} parent=0
    _
  %s7 = ssub.s32 1, %s5
  %s8 = scalar_select 0, %s7, %s5
  %9 = sst [smem:[#allocation2]] %s3
  $region1: #{tpu_custom_call.1} parent=0
    #allocation3 [shape = 'u8[16384]{0}', space=vmem, size = 0x4000, scoped, tag = 'input window, operand 1, single buffered']
    #allocation4 [shape = 's32[1]{0}', space=sflag, size = 0x4, scoped, tag = 'scoped memory for tpu_custom_call.1']
    #allocation5 [shape = 's32[1]{0}', space=sflag, size = 0x4, scoped, tag = 'scoped memory for tpu_custom_call.1']
    #allocation6 [shape = 'u8[512]{0}', space=vmem, size = 0x400, scoped, tag = 'output window, operand 0, single buffered']
    %10 = vsyncpa [#allocation4], 0
    %11 = vsyncpa [#allocation5], 0
    // Predicated region
    $region2: #{tpu_custom_call.1} parent=1 // pred_check
      _
    $region3: #{tpu_custom_call.1} parent=1 // pred_check_branch
      %13 = sbr.rel (0) target = $region5
    $region4: #{tpu_custom_call.1} parent=1 // pred_region
      _
    $region5: #{tpu_custom_call.1} parent=1 // pred_fallthru
      _
    // Predicated region
    $region6: #{tpu_custom_call.1} parent=1 // pred_check
      _
    $region7: #{tpu_custom_call.1} parent=1 // pred_check_branch
      %15 = sbr.rel (0) target = $region9
    $region8: #{tpu_custom_call.1} parent=1 // pred_region
      %s17 = ssub.s32 512, 512
      %18 = vsyncadd [#allocation4], %s17
      %s19 = sshll.u32 [#allocation3], 4
      %s20 = int_to_ptr.vmem [resolvable:$true] %s19
      %25 = dma.hbm_to_vmem [thread:$0]  %s1, 512, %s20, [#allocation4], 128, 128, 8
    $region9: #{tpu_custom_call.1} parent=1 // pred_fallthru
      _
    // Predicated region
    $region10: #{tpu_custom_call.1} parent=1 // pred_check
      _
    $region11: #{tpu_custom_call.1} parent=1 // pred_check_branch
      %27 = sbr.rel (0) target = $region13
    $region12: #{tpu_custom_call.1} parent=1 // pred_region
      _
    $region13: #{tpu_custom_call.1} parent=1 // pred_fallthru
      _
    // Predicated region
    $region14: #{tpu_custom_call.1} parent=1 // pred_check
      _
    $region15: #{tpu_custom_call.1} parent=1 // pred_check_branch
      %29 = sbr.rel (0) target = $region17
    $region16: #{tpu_custom_call.1} parent=1 // pred_region
      _
    $region17: #{tpu_custom_call.1} parent=1 // pred_fallthru
      _
    // Predicated region
    $region18: #{tpu_custom_call.1} parent=1 // pred_check
      _
    $region19: #{tpu_custom_call.1} parent=1 // pred_check_branch
      %31 = sbr.rel (0) target = $region21
    $region20: #{tpu_custom_call.1} parent=1 // pred_region
      %32 = dma.done [#allocation4], 512
    $region21: #{tpu_custom_call.1} parent=1 // pred_fallthru
      _
    %v33 = vld [vmem:[%s0] sm:$0xff]
    %v34 = vld [vmem:[%s0 + $0x8] sm:$0xff]
    %v35 = vld [vmem:[%s0 + $0x10] sm:$0xff]
    %v36 = vld [vmem:[%s0 + $0x18] sm:$0xff]
    %v37 = vld [vmem:[#allocation3] sm:$0xff]
    %v38 = vld [vmem:[#allocation3 + $0x8] sm:$0xff]
    %v39 = vld [vmem:[#allocation3 + $0x10] sm:$0xff]
    %v40 = vld [vmem:[#allocation3 + $0x18] sm:$0xff]
    %v41 = vmul.f32 %v33, %v37
    %v42 = vmul.f32 %v34, %v38
    %v43 = vmul.f32 %v35, %v39
    %v44 = vmul.f32 %v36, %v40
    %v45 = vld [vmem:[%s2] sm:$0xff]
    %v46 = vld [vmem:[%s2 + $0x8] sm:$0xff]
    %v47 = vld [vmem:[%s2 + $0x10] sm:$0xff]
    %v48 = vld [vmem:[%s2 + $0x18] sm:$0xff]
    %50 = vset.pattern.permute.xlu0 0
    %51 = vperm.xlu0 %50, %v45
    %v52 = vpop.permute.xlu0 %51
    %55 = vset.pattern.permute.xlu0 0
    %56 = vperm.xlu0 %55, %v46
    %v57 = vpop.permute.xlu0 %56
    %60 = vset.pattern.permute.xlu0 0
    %61 = vperm.xlu0 %60, %v47
    %v62 = vpop.permute.xlu0 %61
    %65 = vset.pattern.permute.xlu0 0
    %66 = vperm.xlu0 %65, %v48
    %v67 = vpop.permute.xlu0 %66
    %v69 = vmul.f32 %v41, %v52
    %v70 = vmul.f32 %v42, %v57
    %v71 = vmul.f32 %v43, %v62
    %v72 = vmul.f32 %v44, %v67
    %v73 = vadd.f32 %v69, %v70
    %v74 = vadd.f32 %v73, %v71
    %v75 = vadd.f32 %v74, %v72
    %v76 = vrot.slane %v75, 4
    %v77 = vadd.f32 %v75, %v76
    %v78 = vrot.slane %v77, 2
    %v79 = vadd.f32 %v77, %v78
    %v80 = vrot.slane %v79, 1
    %v81 = vadd.f32 %v79, %v80
    %s82 = sld [smem:[#allocation2]]
    %v83 = vstv %s82
    %v84 = vadd.f32 %v81, %v83
    %v85 = vxor.u32 %v84, 2147483648
    %v86 = vmul.f32 %v85, 1.442695
    %v87 = vpow.pop %v86
    %v88 = vadd.f32 %v87, 1.0
    %v89 = vrcp.pop %v88
    %v90 = vmul.f32 1.0, %v89
    %91 = vst [vmem:[#allocation6] sm:$0x1] %v90
    // Predicated region
    $region22: #{tpu_custom_call.1} parent=1 // pred_check
      _
    $region23: #{tpu_custom_call.1} parent=1 // pred_check_branch
      %93 = sbr.rel (0) target = $region25
    $region24: #{tpu_custom_call.1} parent=1 // pred_region
      %s95 = ssub.s32 16, 16
      %96 = vsyncadd [#allocation5], %s95
      %s98 = sshll.u32 [#allocation6], 4
      %s99 = int_to_ptr.vmem [resolvable:$true] %s98
      %101 = dma.vmem_to_hbm [thread:$0]  %s99, 16, %s4, [#allocation5]
    $region25: #{tpu_custom_call.1} parent=1 // pred_fallthru
      _
    // Predicated region
    $region26: #{tpu_custom_call.1} parent=1 // pred_check
      _
    $region27: #{tpu_custom_call.1} parent=1 // pred_check_branch
      %103 = sbr.rel (0) target = $region29
    $region28: #{tpu_custom_call.1} parent=1 // pred_region
      %104 = dma.done [#allocation5], 16
    $region29: #{tpu_custom_call.1} parent=1 // pred_fallthru
      _
    %105 = vsyncpa [#allocation4], 1
    %106 = vsyncpa [#allocation5], 1

</llo_original>
